<compile_context>
chip_gen: v5e
topology: v5e:2x2
jax: 0.10.0
libtpu: 0.0.40
codegen_flags: <defaults>
</compile_context>

<pallas_src>
from functools import partial

import jax
import jax.numpy as jnp
from jax.experimental import pallas as pl
from jax.experimental.pallas import tpu as pltpu

IGNORE_INDEX = -100
_MB = 1024 * 1024


def _cdiv(a, b):
    return -(-a // b)


def _round_up(x, m):
    return _cdiv(x, m) * m


def _ce_online_kernel(logits_ref, gold_ref, loss_ref, m_scr, l_scr, *, strip,
                      last_cols):
    """Online (chunked-vocab) cross entropy.

    logits_ref: (TR, TV) input dtype -- one vocab chunk of TR rows
    gold_ref:   (TR, 1)  float32     -- gold-label logit per row (pre-gathered)
    loss_ref:   (TR, 1)  float32     -- per-row NLL (garbage for invalid rows,
                                        masked in the wrapper)
    m_scr/l_scr:(TR, 1)  float32     -- running max / running exp-sum
    strip:      static int           -- lane-strip width for bounded temporaries
    last_cols:  static int           -- valid columns in the LAST vocab chunk
    """
    j = pl.program_id(1)
    nj = pl.num_programs(1)
    tv = logits_ref.shape[1]

    @pl.when(j == 0)
    def _init():
        m_scr[...] = jnp.full(m_scr.shape, -jnp.inf, m_scr.dtype)
        l_scr[...] = jnp.zeros(l_scr.shape, l_scr.dtype)

    def update(raw):
        # max in the input dtype (exact; half the VALU slots for bf16 inputs),
        # sub/exp/accumulate in f32.
        m_old = m_scr[...]
        m_new = jnp.maximum(
            m_old, jnp.max(raw, axis=-1, keepdims=True).astype(jnp.float32))
        p = jnp.exp(raw.astype(jnp.float32) - m_new)
        l_scr[...] = (jnp.exp(m_old - m_new) * l_scr[...]
                      + jnp.sum(p, axis=-1, keepdims=True))
        m_scr[...] = m_new

    def run(cols):  # cols: static number of valid columns to process
        n_full, tail = divmod(cols, strip)
        if n_full > 0:
            def body(s, carry):
                off = pl.multiple_of(s * strip, strip)
                update(logits_ref[:, pl.ds(off, strip)])
                return carry
            jax.lax.fori_loop(0, n_full, body, 0, unroll=True)
        if tail > 0:
            update(logits_ref[:, pl.ds(n_full * strip, tail)])

    if last_cols == tv:
        run(tv)
    else:
        @pl.when(j < nj - 1)
        def _full():
            run(tv)

        @pl.when(j == nj - 1)
        def _ragged():
            run(last_cols)

    @pl.when(j == nj - 1)
    def _finalize():
        loss_ref[...] = m_scr[...] + jnp.log(l_scr[...]) - gold_ref[...]


def _pick_tiles(n_rows, vocab, itemsize):
    # Vocab tile: for V <= 8192 use the full vocab (a block equal to the full
    # array dim is always legal, even when V % 128 != 0); for larger V use a
    # fixed lane-aligned 8192 tile and process only the valid columns of the
    # ragged last chunk in-kernel.
    vocab_tile = vocab if vocab <= 8192 else 8192
    strip = min(512, vocab_tile)

    # Per-step logits block target, sized per TPU generation (bigger HBM BW /
    # VMEM -> bigger blocks to amortize the ~0.35 us per-grid-step overhead).
    try:
        vmem_bytes = pltpu.get_tpu_info().vmem_capacity_bytes
    except Exception:  # not resolvable at trace time: conservative default
        vmem_bytes = 64 * _MB
    target_bytes = int(min(8 * _MB, vmem_bytes // 16))

    row_tile = target_bytes // max(1, vocab_tile * itemsize)
    row_tile = max(16, min(1024, (row_tile // 16) * 16))
    # Keep >= 2 row blocks when there is enough work (v7x megacore balance).
    if n_rows >= 32:
        row_tile = min(row_tile, max(16, (_cdiv(n_rows, 2) // 16) * 16))
    row_tile = min(row_tile, _round_up(n_rows, 16))
    return row_tile, vocab_tile, strip


def gpt_lm_loss(logits, labels):
    """Causal LM loss. logits: (B, S, V) float (f32/bf16), labels: (B, S) int."""
    B, S, V = logits.shape
    assert labels.shape == (B, S)
    itemsize = jnp.dtype(logits.dtype).itemsize

    # Free reshape of logits -- no slice, no HBM copy.  The causal shift lives
    # entirely in the labels: row r = b*S + s uses labels[b, s+1]; the last
    # token of every sequence is masked with IGNORE_INDEX.
    flat_logits = logits.reshape(B * S, V)
    shift_labels = jnp.concatenate(
        [labels[:, 1:].astype(jnp.int32),
         jnp.full((B, 1), IGNORE_INDEX, jnp.int32)], axis=1).reshape(-1)
    n_rows = B * S

    valid = shift_labels != IGNORE_INDEX
    # Gold-label logit gathered once in the wrapper (tiny vs. the logits read).
    # Out-of-range / ignored labels are clamped; those rows are masked below.
    safe_labels = jnp.clip(shift_labels, 0, V - 1)
    gold = jnp.take_along_axis(flat_logits, safe_labels[:, None],
                               axis=-1).astype(jnp.float32)          # (N, 1)

    row_tile, vocab_tile, strip = _pick_tiles(n_rows, V, itemsize)
    n_row_blocks = _cdiv(n_rows, row_tile)
    n_vocab_blocks = _cdiv(V, vocab_tile)
    last_cols = V - (n_vocab_blocks - 1) * vocab_tile
    n_rows_pad = n_row_blocks * row_tile

    # Only the tiny gold array is padded; a ragged last row block may read
    # undefined logits rows -- every reduction is strictly per-row and invalid
    # rows are masked out in the wrapper, so that is safe.
    gold_pad = jnp.pad(gold, ((0, n_rows_pad - n_rows), (0, 0)))

    block_bytes = row_tile * vocab_tile * itemsize
    vmem_limit = int(min(64 * _MB, max(32 * _MB, 3 * block_bytes + 16 * _MB)))

    per_row = pl.pallas_call(
        partial(_ce_online_kernel, strip=strip, last_cols=last_cols),
        out_shape=jax.ShapeDtypeStruct((n_rows_pad, 1), jnp.float32),
        grid_spec=pltpu.PrefetchScalarGridSpec(
            num_scalar_prefetch=0,
            grid=(n_row_blocks, n_vocab_blocks),
            in_specs=[
                pl.BlockSpec((row_tile, vocab_tile), lambda i, j: (i, j)),
                pl.BlockSpec((row_tile, 1), lambda i, j: (i, 0)),
            ],
            out_specs=pl.BlockSpec((row_tile, 1), lambda i, j: (i, 0)),
            scratch_shapes=[
                pltpu.VMEM((row_tile, 1), jnp.float32),  # running max
                pltpu.VMEM((row_tile, 1), jnp.float32),  # running exp-sum
            ],
        ),
        compiler_params=pltpu.CompilerParams(
            dimension_semantics=("parallel", "arbitrary"),
            vmem_limit_bytes=vmem_limit),
        cost_estimate=pl.CostEstimate(
            flops=int(4 * n_rows * V),
            transcendentals=int(n_rows * V),
            bytes_accessed=int(n_rows * V * itemsize + 12 * n_rows)),
    )(flat_logits, gold_pad)

    # Mean over valid (non-ignored) tokens -- matches nn.CrossEntropyLoss
    # default.  If every label is IGNORE_INDEX this is 0/0 = NaN, matching
    # PyTorch's behavior.
    per_row = per_row[:n_rows, 0]
    total = jnp.sum(jnp.where(valid, per_row, 0.0))
    count = jnp.sum(valid.astype(jnp.float32))
    return total / count


def _reference_loss(logits, labels):
    """Pure-JAX reference for sanity check."""
    B, S, V = logits.shape
    lg = logits[:, :-1, :].reshape(-1, V).astype(jnp.float32)
    lb = labels[:, 1:].reshape(-1)
    valid = lb != IGNORE_INDEX
    safe = jnp.clip(lb, 0, V - 1)
    lse = jax.nn.logsumexp(lg, axis=-1)
    gold = jnp.take_along_axis(lg, safe[:, None], axis=-1)[:, 0]
    nll = jnp.where(valid, lse - gold, 0.0)
    return jnp.sum(nll) / jnp.sum(valid.astype(jnp.float32))


if __name__ == "__main__":
    key = jax.random.PRNGKey(0)
    k1, k2, k3, k4 = jax.random.split(key, 4)

    # Test 1: small GPT-like shapes (batch=2, seq=8, vocab=128), no ignored tokens.
    B, S, V = 2, 8, 128
    logits = jax.random.normal(k1, (B, S, V), dtype=jnp.float32)
    labels = jax.random.randint(k2, (B, S), 0, V, dtype=jnp.int32)
    loss = jax.block_until_ready(jax.jit(gpt_lm_loss)(logits, labels))
    ref = _reference_loss(logits, labels)
    assert jnp.allclose(loss, ref, rtol=1e-4, atol=1e-4), (loss, ref)

    # Test 2: multi-chunk vocab with a ragged last chunk + ignore_index labels.
    B2, S2, V2 = 2, 8, 8320          # 8320 = 8192 + 128 -> 2 vocab chunks
    logits2 = jax.random.normal(k3, (B2, S2, V2), dtype=jnp.float32)
    labels2 = jax.random.randint(k4, (B2, S2), 0, V2, dtype=jnp.int32)
    labels2 = labels2.at[0, 3].set(IGNORE_INDEX).at[1, 5].set(IGNORE_INDEX)
    loss2 = jax.block_until_ready(jax.jit(gpt_lm_loss)(logits2, labels2))
    ref2 = _reference_loss(logits2, labels2)
    assert jnp.allclose(loss2, ref2, rtol=1e-4, atol=1e-4), (loss2, ref2)

    print("KERNEL_OK")
</pallas_src>

<mosaic_0001>
module attributes {stable_mosaic.version = 11 : i64} {
  func.func @_ce_online_kernel(%arg0: i32, %arg1: i32, %arg2: memref<16x128xf32, #tpu.memory_space<vmem>>, %arg3: memref<16x1xf32, #tpu.memory_space<vmem>>, %arg4: memref<16x1xf32, #tpu.memory_space<vmem>>, %arg5: memref<16x1xf32, #tpu.memory_space<vmem>>, %arg6: memref<16x1xf32, #tpu.memory_space<vmem>>) attributes {dimension_semantics = [#tpu.dimension_semantics<parallel>, #tpu.dimension_semantics<arbitrary>], iteration_bounds = array<i64: 1, 1>, scalar_prefetch = 0 : i64, scratch_operands = 2 : i64, tpu.core_type = #tpu.core_type<tc>, window_params = [{transform_indices = @transform_0, window_bounds = array<i64: 16, 128>}, {transform_indices = @transform_1, window_bounds = array<i64: 16, 1>}, {transform_indices = @transform_2, window_bounds = array<i64: 16, 1>}]} {
    %c0_i32 = arith.constant 0 : i32
    %0 = arith.cmpi eq, %arg1, %c0_i32 : i32
    %1 = arith.extui %0 : i1 to i32
    %c0_i32_0 = arith.constant 0 : i32
    %2 = arith.cmpi ne, %1, %c0_i32_0 : i32
    scf.if %2 {
      %cst_13 = arith.constant 0xFF800000 : f32
      %26 = vector.broadcast %cst_13 : f32 to vector<16x1xf32>
      %c0_14 = arith.constant 0 : index
      %c0_15 = arith.constant 0 : index
      %27 = vector.load %arg5[%c0_14, %c0_15] : memref<16x1xf32, #tpu.memory_space<vmem>>, vector<16x1xf32>
      tpu.vector_store %arg5[%c0_14, %c0_15], %26 {strides = array<i32>} : memref<16x1xf32, #tpu.memory_space<vmem>>, vector<16x1xf32>,
      %cst_16 = arith.constant 0.000000e+00 : f32
      %28 = vector.broadcast %cst_16 : f32 to vector<16x1xf32>
      %c0_17 = arith.constant 0 : index
      %c0_18 = arith.constant 0 : index
      %29 = vector.load %arg6[%c0_17, %c0_18] : memref<16x1xf32, #tpu.memory_space<vmem>>, vector<16x1xf32>
      tpu.vector_store %arg6[%c0_17, %c0_18], %28 {strides = array<i32>} : memref<16x1xf32, #tpu.memory_space<vmem>>, vector<16x1xf32>,
    } else {
    }
    %c0_i32_1 = arith.constant 0 : i32
    %c128_i32 = arith.constant 128 : i32
    %3 = arith.muli %c0_i32_1, %c128_i32 : i32
    %4 = tpu.assume_multiple %3, 128 : i32
    %c0 = arith.constant 0 : index
    %5 = arith.index_cast %4 : i32 to index
    %6 = vector.load %arg2[%c0, %5] : memref<16x128xf32, #tpu.memory_space<vmem>>, vector<16x128xf32>
    %c0_2 = arith.constant 0 : index
    %c0_3 = arith.constant 0 : index
    %7 = vector.load %arg5[%c0_2, %c0_3] : memref<16x1xf32, #tpu.memory_space<vmem>>, vector<16x1xf32>
    %cst = arith.constant dense<0xFF800000> : vector<16xf32>
    %8 = vector.multi_reduction <maximumf>, %6, %cst [1] : vector<16x128xf32> to vector<16xf32>
    %9 = vector.shape_cast %8 : vector<16xf32> to vector<16x1xf32>
    %10 = arith.maximumf %7, %9 : vector<16x1xf32>
    %11 = vector.broadcast %10 : vector<16x1xf32> to vector<16x128xf32>
    %12 = arith.subf %6, %11 : vector<16x128xf32>
    %13 = math.exp %12 : vector<16x128xf32>
    %14 = arith.subf %7, %10 : vector<16x1xf32>
    %15 = math.exp %14 : vector<16x1xf32>
    %c0_4 = arith.constant 0 : index
    %c0_5 = arith.constant 0 : index
    %16 = vector.load %arg6[%c0_4, %c0_5] : memref<16x1xf32, #tpu.memory_space<vmem>>, vector<16x1xf32>
    %17 = arith.mulf %15, %16 : vector<16x1xf32>
    %cst_6 = arith.constant dense<0.000000e+00> : vector<16xf32>
    %18 = vector.multi_reduction <add>, %13, %cst_6 [1] : vector<16x128xf32> to vector<16xf32>
    %19 = vector.shape_cast %18 : vector<16xf32> to vector<16x1xf32>
    %20 = arith.addf %17, %19 : vector<16x1xf32>
    %c0_7 = arith.constant 0 : index
    %c0_8 = arith.constant 0 : index
    %21 = vector.load %arg6[%c0_7, %c0_8] : memref<16x1xf32, #tpu.memory_space<vmem>>, vector<16x1xf32>
    tpu.vector_store %arg6[%c0_7, %c0_8], %20 {strides = array<i32>} : memref<16x1xf32, #tpu.memory_space<vmem>>, vector<16x1xf32>,
    %c0_9 = arith.constant 0 : index
    %c0_10 = arith.constant 0 : index
    %22 = vector.load %arg5[%c0_9, %c0_10] : memref<16x1xf32, #tpu.memory_space<vmem>>, vector<16x1xf32>
    tpu.vector_store %arg5[%c0_9, %c0_10], %10 {strides = array<i32>} : memref<16x1xf32, #tpu.memory_space<vmem>>, vector<16x1xf32>,
    %c1_i32 = arith.constant 1 : i32
    %c0_i32_11 = arith.constant 0 : i32
    %23 = arith.cmpi eq, %arg1, %c0_i32_11 : i32
    %24 = arith.extui %23 : i1 to i32
    %c0_i32_12 = arith.constant 0 : i32
    %25 = arith.cmpi ne, %24, %c0_i32_12 : i32
    scf.if %25 {
      %c0_13 = arith.constant 0 : index
      %c0_14 = arith.constant 0 : index
      %26 = vector.load %arg5[%c0_13, %c0_14] : memref<16x1xf32, #tpu.memory_space<vmem>>, vector<16x1xf32>
      %c0_15 = arith.constant 0 : index
      %c0_16 = arith.constant 0 : index
      %27 = vector.load %arg6[%c0_15, %c0_16] : memref<16x1xf32, #tpu.memory_space<vmem>>, vector<16x1xf32>
      %28 = math.log %27 : vector<16x1xf32>
      %29 = arith.addf %26, %28 : vector<16x1xf32>
      %c0_17 = arith.constant 0 : index
      %c0_18 = arith.constant 0 : index
      %30 = vector.load %arg3[%c0_17, %c0_18] : memref<16x1xf32, #tpu.memory_space<vmem>>, vector<16x1xf32>
      %31 = arith.subf %29, %30 : vector<16x1xf32>
      %c0_19 = arith.constant 0 : index
      %c0_20 = arith.constant 0 : index
      %32 = vector.load %arg4[%c0_19, %c0_20] : memref<16x1xf32, #tpu.memory_space<vmem>>, vector<16x1xf32>
      tpu.vector_store %arg4[%c0_19, %c0_20], %31 {strides = array<i32>} : memref<16x1xf32, #tpu.memory_space<vmem>>, vector<16x1xf32>,
    } else {
    }
    return
  }
  func.func @transform_0(%arg0: i32, %arg1: i32) -> (i32, i32) {
    %c0_i32 = arith.constant 0 : i32
    return %arg0, %arg1 : i32, i32
  }
  func.func @transform_1(%arg0: i32, %arg1: i32) -> (i32, i32) {
    %c0_i32 = arith.constant 0 : i32
    %c0_i32_0 = arith.constant 0 : i32
    return %arg0, %c0_i32 : i32, i32
  }
  func.func @transform_2(%arg0: i32, %arg1: i32) -> (i32, i32) {
    %c0_i32 = arith.constant 0 : i32
    %c0_i32_0 = arith.constant 0 : i32
    return %arg0, %c0_i32 : i32, i32
  }
}

</mosaic_0001>

<llo_original>
// kernel: gpt_lm_loss.1
$region0: #{gpt_lm_loss.1}
  #allocation0 [shape = 'u32[]', space=smem, size = 0x4, offset = 0x4, fixed_abs, tag = 'smem constant byte address 0x4 - core index']
  #allocation1 [shape = 'u32[72,128]{1,0:T(1,128)}', space=vmem, size = 0x9000, scoped, tag = 'internal scratch']
  #allocation2 [shape = 'f32[16,1]{1,0:T(8,128)}', space=vmem, size = 0x2000, scoped, tag = 'scratch operand']
  #allocation3 [shape = 'f32[16,1]{1,0:T(8,128)}', space=vmem, size = 0x2000, scoped, tag = 'scratch operand']
  %s0 = inlined_call_operand.vmem [shape: f32[16,128], index: 0, kind: input, shape index: {}]
  %s1 = inlined_call_operand.vmem [shape: f32[16,1], index: 1, kind: input, shape index: {}]
  %s2 = inlined_call_operand.vmem [shape: f32[16,1], index: 2, kind: output, shape index: {}]
  %s3 = sld [smem:[#allocation0]]
  $region26: #{gpt_lm_loss.1} parent=0
    _
  %s5 = ssub.s32 1, %s3
  %s6 = scalar_select 0, %s5, %s3
  // Predicated region
  $region2: #{gpt_lm_loss.1} parent=0 // pred_check
    _
  $region3: #{gpt_lm_loss.1} parent=0 // pred_check_branch
    %8 = sbr.rel (0) target = $region5
  $region4: #{gpt_lm_loss.1} parent=0 // pred_region
    _
  $region5: #{gpt_lm_loss.1} parent=0 // pred_fallthru
    _
  // Predicated region
  $region6: #{gpt_lm_loss.1} parent=0 // pred_check
    _
  $region7: #{gpt_lm_loss.1} parent=0 // pred_check_branch
    %10 = sbr.rel (0) target = $region9
  $region8: #{gpt_lm_loss.1} parent=0 // pred_region
    _
  $region9: #{gpt_lm_loss.1} parent=0 // pred_fallthru
    _
  %p11 = scmp.eq.s32.totalorder 0, 0
  // Predicated region
  $region10: #{gpt_lm_loss.1} parent=0 // pred_check
    %p12 = pneg %p11
  $region11: #{gpt_lm_loss.1} parent=0 // pred_check_branch
    %14 = sbr.rel (%p12) target = $region13
  $region12: #{gpt_lm_loss.1} parent=0 // pred_region
    %vm15 = vcmask 7168
    %16 = vst.msk [vmem:[#allocation2] sm:$0xff] %vm15, -inf
    %17 = vst.msk [vmem:[#allocation2 + $0x8] sm:$0xff] %vm15, -inf
    %18 = vst.msk [vmem:[#allocation3] sm:$0xff] %vm15, 0.0
    %19 = vst.msk [vmem:[#allocation3 + $0x8] sm:$0xff] %vm15, 0.0
  $region13: #{gpt_lm_loss.1} parent=0 // pred_fallthru
    _
  %v20 = vld [vmem:[%s0] sm:$0xff]
  %v21 = vld [vmem:[%s0 + $0x8] sm:$0xff]
  %v22 = vld [vmem:[#allocation2] sm:$0xff]
  %v23 = vld [vmem:[#allocation2 + $0x8] sm:$0xff]
  %24 = vmax.xlane.f32.xlu0 %v20
  %v25 = vpop.xlane.xlu0 %24
  %26 = vmax.xlane.f32.xlu0 %v21
  %v27 = vpop.xlane.xlu0 %26
  %v28 = vmax.f32 %v22, %v25
  %v29 = vmax.f32 %v23, %v27
  %31 = vset.pattern.permute.xlu0 0
  %32 = vperm.xlu0 %31, %v28
  %v33 = vpop.permute.xlu0 %32
  %36 = vset.pattern.permute.xlu0 0
  %37 = vperm.xlu0 %36, %v29
  %v38 = vpop.permute.xlu0 %37
  %v40 = vsub.f32 %v20, %v33
  %v41 = vsub.f32 %v21, %v38
  %v42 = vmul.f32 %v40, 1.442695
  %v43 = vpow.pop %v42
  %v44 = vmul.f32 %v41, 1.442695
  %v45 = vpow.pop %v44
  %v46 = vsub.f32 %v22, %v28
  %v47 = vsub.f32 %v23, %v29
  %v48 = vmul.f32 %v46, 1.442695
  %v49 = vpow.pop %v48
  %v50 = vmul.f32 %v47, 1.442695
  %v51 = vpow.pop %v50
  %v52 = vld [vmem:[#allocation3] sm:$0xff]
  %v53 = vld [vmem:[#allocation3 + $0x8] sm:$0xff]
  %v54 = vmul.f32 %v49, %v52
  %v55 = vmul.f32 %v51, %v53
  %56 = vadd.xlane.f32.xlu0 %v43
  %v57 = vpop.xlane.xlu0 %56
  %58 = vadd.xlane.f32.xlu0 %v45
  %v59 = vpop.xlane.xlu0 %58
  %v60 = vadd.f32 %v54, %v57
  %v61 = vadd.f32 %v55, %v59
  %vm62 = vcmask 7168
  %63 = vst.msk [vmem:[#allocation3] sm:$0xff] %vm62, %v60
  %64 = vst.msk [vmem:[#allocation3 + $0x8] sm:$0xff] %vm62, %v61
  %65 = vst.msk [vmem:[#allocation2] sm:$0xff] %vm62, %v28
  %66 = vst.msk [vmem:[#allocation2 + $0x8] sm:$0xff] %vm62, %v29
  // Predicated region
  $region14: #{gpt_lm_loss.1} parent=0 // pred_check
    %p67 = pneg %p11
  $region15: #{gpt_lm_loss.1} parent=0 // pred_check_branch
    %69 = sbr.rel (%p67) target = $region17
  $region16: #{gpt_lm_loss.1} parent=0 // pred_region
    %v70 = vld [vmem:[#allocation2] sm:$0xff]
    %v71 = vld [vmem:[#allocation2 + $0x8] sm:$0xff]
    %v72 = vld [vmem:[#allocation3] sm:$0xff]
    %v73 = vld [vmem:[#allocation3 + $0x8] sm:$0xff]
    %v74 = vlog2.pop %v72
    %v75 = vmul.f32 %v74, 0.6931472
    %v76 = vlog2.pop %v73
    %v77 = vmul.f32 %v76, 0.6931472
    %v78 = vadd.f32 %v70, %v75
    %v79 = vadd.f32 %v71, %v77
    %v80 = vld [vmem:[%s1] sm:$0xff]
    %v81 = vld [vmem:[%s1 + $0x8] sm:$0xff]
    %v82 = vsub.f32 %v78, %v80
    %v83 = vsub.f32 %v79, %v81
    %84 = vst.msk [vmem:[%s2] sm:$0xff] %vm62, %v82
    %85 = vst.msk [vmem:[%s2 + $0x8] sm:$0xff] %vm62, %v83
  $region17: #{gpt_lm_loss.1} parent=0 // pred_fallthru
    _
  // Predicated region
  $region18: #{gpt_lm_loss.1} parent=0 // pred_check
    _
  $region19: #{gpt_lm_loss.1} parent=0 // pred_check_branch
    %87 = sbr.rel (0) target = $region21
  $region20: #{gpt_lm_loss.1} parent=0 // pred_region
    _
  $region21: #{gpt_lm_loss.1} parent=0 // pred_fallthru
    _
  // Predicated region
  $region22: #{gpt_lm_loss.1} parent=0 // pred_check
    _
  $region23: #{gpt_lm_loss.1} parent=0 // pred_check_branch
    %89 = sbr.rel (0) target = $region25
  $region24: #{gpt_lm_loss.1} parent=0 // pred_region
    _
  $region25: #{gpt_lm_loss.1} parent=0 // pred_fallthru
    _

</llo_original>
